<compile_context>
chip_gen: v7x
topology: tpu7x:2x2x1
jax: 0.10.0
libtpu: 0.0.40
codegen_flags: <defaults>
</compile_context>

<pallas_src>
import functools

import jax
import jax.numpy as jnp
from jax import lax
from jax.experimental import pallas as pl
from jax.experimental.pallas import tpu as pltpu


def _round_up(n, m):
    return ((n + m - 1) // m) * m


def _pad2(a, rows, cols):
    pr, pc = rows - a.shape[0], cols - a.shape[1]
    if pr or pc:
        a = jnp.pad(a, ((0, pr), (0, pc)))
    return a


def _vmem_limit_bytes(est):
    """Per-generation scoped-VMEM cap with headroom for Mosaic internal scratch."""
    try:
        phys = int(pltpu.get_tpu_info().vmem_capacity_bytes)
    except Exception:  # no TPU info available -> assume the smallest (v7x-like) budget
        phys = 64 << 20
    if phys > (64 << 20):          # v5e / v6e: 128 MiB physical -> allow ~104 MiB
        cap = phys - (24 << 20)
    else:                           # v7x: 64 MiB physical -> cap ~51 MiB
        cap = (phys * 4) // 5
    return int(min(cap, max(32 << 20, est)))


def _sae_kernel(k, x_ref, w_enc_ref, b_enc_ref, w_dec_ref, b_dec_ref, x_rec_ref):
    x = x_ref[...]                       # (TB, Dp) f32
    b_dec = b_dec_ref[...]               # (1, Dp)  f32

    # Encoder: (x - b_dec) @ W_enc_T + b_enc.  bf16 MXU operands, f32 accumulation.
    sae_in = (x - b_dec).astype(jnp.bfloat16)
    pre = jnp.dot(sae_in, w_enc_ref[...], preferred_element_type=jnp.float32)
    pre = jnp.maximum(pre + b_enc_ref[...], 0.0)      # (TB, Hp) f32, >= 0 after relu

    # Top-k along the hidden axis: k max-peel iterations that only track the running
    # threshold tau (k-th distinct max per row); ONE cross-lane max + ONE select/store
    # per iteration.  z is built in a single final pass.  pre >= 0, so removed entries
    # (-inf) can never win again; the `pre > 0` guard keeps zero-valued (and padded)
    # latents out of z, which matches the previous per-iteration m > 0 guard: scattering
    # zeros is a no-op for x_rec.  Exact f32 ties are all kept (measure-zero for real data).
    def body(_, carry):
        work, _ = carry
        m = jnp.max(work, axis=-1, keepdims=True)     # (TB, 1)
        work = jnp.where(work == m, -jnp.inf, work)
        return work, m

    tau0 = jnp.zeros((pre.shape[0], 1), jnp.float32)
    _, tau = lax.fori_loop(0, k, body, (pre, tau0), unroll=True)

    z = jnp.where(jnp.logical_and(pre >= tau, pre > 0.0), pre, 0.0)

    # Decoder: z @ W_dec + b_dec.  bf16 MXU operands, f32 accumulation.
    x_rec = jnp.dot(z.astype(jnp.bfloat16), w_dec_ref[...],
                    preferred_element_type=jnp.float32)
    x_rec_ref[...] = x_rec + b_dec


def sae_forward(x, w_enc, b_enc, w_dec, b_dec, k, *, max_tile_b=256):
    """x: (B, d_in); w_enc: (H, d_in); b_enc: (H,); w_dec: (H, d_in); b_dec: (d_in,)."""
    B, d_in = x.shape
    H = w_enc.shape[0]

    # Lane/sublane-aligned padded shapes (128 lanes, 8 sublanes).
    d_pad = _round_up(d_in, 128)
    h_pad = _round_up(H, 128)

    # Batch tile: multiple of 8 rows, <= max_tile_b.  If the batch allows, keep >= 2 grid
    # steps so the "parallel" axis can shard across both v7x TensorCores.
    tile_b = min(max_tile_b, _round_up(B, 8))
    if B > 8 and (_round_up(B, tile_b) // tile_b) < 2:
        tile_b = max(8, _round_up((B + 1) // 2, 8))
    b_pad = _round_up(B, tile_b)
    grid = (b_pad // tile_b,)

    x_p = _pad2(x.astype(jnp.float32), b_pad, d_pad)
    # Pre-transpose the encoder weight once in the wrapper -> canonical (Dp)x(Hp) RHS.
    w_enc_t_p = _pad2(jnp.transpose(w_enc).astype(jnp.bfloat16), d_pad, h_pad)
    w_dec_p = _pad2(w_dec.astype(jnp.bfloat16), h_pad, d_pad)
    b_enc_p = _pad2(b_enc.reshape(1, H).astype(jnp.float32), 1, h_pad)
    b_dec_p = _pad2(b_dec.reshape(1, d_in).astype(jnp.float32), 1, d_pad)

    # VMEM budget (conservative: assume resident weights are still double-buffered in case
    # the Buffered(1) request is ignored): weights + double-buffered f32 activation tiles +
    # ~3x (TB, Hp) f32 working set for pre/work/z, with headroom.
    wbytes = 2 * (2 * h_pad * d_pad * 2)
    tile_io = 4 * tile_b * d_pad * 4
    hidden = 3 * tile_b * h_pad * 4
    est = wbytes + tile_io + hidden + (h_pad + d_pad) * 16 + (4 << 20)
    vmem_limit = _vmem_limit_bytes(est)

    flops = 2 * 2 * b_pad * d_pad * h_pad                       # two matmuls
    bytes_accessed = (2 * b_pad * d_pad * 4                      # x in + x_rec out (f32)
                      + 2 * h_pad * d_pad * 2                    # bf16 weights
                      + (h_pad + d_pad) * 4)                     # biases

    kernel = functools.partial(_sae_kernel, int(k))

    def _run(use_buffered):
        resident_kw = {"pipeline_mode": pl.Buffered(1)} if use_buffered else {}
        in_specs = [
            pl.BlockSpec((tile_b, d_pad), lambda i: (i, 0)),                  # x tile (pipelined)
            pl.BlockSpec((d_pad, h_pad), lambda i: (0, 0), **resident_kw),    # W_enc^T (resident)
            pl.BlockSpec((1, h_pad), lambda i: (0, 0), **resident_kw),        # b_enc (resident)
            pl.BlockSpec((h_pad, d_pad), lambda i: (0, 0), **resident_kw),    # W_dec (resident)
            pl.BlockSpec((1, d_pad), lambda i: (0, 0), **resident_kw),        # b_dec (resident)
        ]
        return pl.pallas_call(
            kernel,
            grid=grid,
            in_specs=in_specs,
            out_specs=pl.BlockSpec((tile_b, d_pad), lambda i: (i, 0)),
            out_shape=jax.ShapeDtypeStruct((b_pad, d_pad), jnp.float32),
            compiler_params=pltpu.CompilerParams(
                dimension_semantics=("parallel",),
                vmem_limit_bytes=vmem_limit),
            cost_estimate=pl.CostEstimate(flops=flops, transcendentals=0,
                                          bytes_accessed=bytes_accessed),
        )(x_p, w_enc_t_p, b_enc_p, w_dec_p, b_dec_p)

    try:
        x_rec_p = _run(True)
    except Exception:
        # Fallback: default double-buffered resident operands (correctness identical).
        x_rec_p = _run(False)

    x_rec = x_rec_p[:B, :d_in]

    # FVU on the real (unpadded) batch, in plain XLA (whole-batch mean can't live in a
    # batch-tiled kernel body).  Matches the module: no epsilon guard on the denominator.
    e = x_rec - x
    total_var = jnp.sum((x - jnp.mean(x, axis=0, keepdims=True)) ** 2)
    fvu = jnp.sum(e * e) / total_var
    return x_rec, fvu


def sae_reference(x, w_enc, b_enc, w_dec, b_dec, k):
    """Plain-JAX reference with the same precision policy (bf16 operands, f32 accumulation)."""
    sae_in = (x - b_dec[None, :]).astype(jnp.bfloat16)
    pre = lax.dot_general(
        sae_in, w_enc.astype(jnp.bfloat16),
        dimension_numbers=(((1,), (1,)), ((), ())),
        preferred_element_type=jnp.float32)
    pre = jnp.maximum(pre + b_enc[None, :], 0.0)
    vals, idxs = lax.top_k(pre, k)
    z = jnp.zeros_like(pre)
    z = jax.vmap(lambda zr, ir, vr: zr.at[ir].set(vr))(z, idxs, vals)
    x_rec = jnp.dot(z.astype(jnp.bfloat16), w_dec.astype(jnp.bfloat16),
                    preferred_element_type=jnp.float32) + b_dec[None, :]
    e = x_rec - x
    fvu = jnp.sum(e * e) / jnp.sum((x - jnp.mean(x, axis=0, keepdims=True)) ** 2)
    return x_rec, fvu


if __name__ == "__main__":
    # Small config consistent with the module: input_dim=32, sae_scale_size=4 -> hidden=128, sae_k=8
    B, d_in, scale_size, k = 8, 32, 4, 8
    H = d_in * scale_size

    key = jax.random.PRNGKey(0)
    kx, kw = jax.random.split(key)

    # Deterministic "nn.Linear"-style init: U(-1/sqrt(d_in), 1/sqrt(d_in)), encoder bias zeroed.
    bound = 1.0 / jnp.sqrt(jnp.float32(d_in))
    w_enc = jax.random.uniform(kw, (H, d_in), jnp.float32, minval=-bound, maxval=bound)
    b_enc = jnp.zeros((H,), jnp.float32)

    # W_dec = clone of encoder weight, rows normalized to unit norm (+ f32 eps), b_dec zeros.
    eps = jnp.finfo(jnp.float32).eps
    norm = jnp.linalg.norm(w_enc, axis=1, keepdims=True)
    w_dec = w_enc / (norm + eps)
    b_dec = jnp.zeros((d_in,), jnp.float32)

    x = jax.random.normal(kx, (B, d_in), jnp.float32)

    x_rec, fvu = sae_forward(x, w_enc, b_enc, w_dec, b_dec, k)
    jax.block_until_ready((x_rec, fvu))

    x_ref, fvu_ref = sae_reference(x, w_enc, b_enc, w_dec, b_dec, k)
    assert jnp.allclose(x_rec, x_ref, atol=1e-4, rtol=1e-4), \
        float(jnp.max(jnp.abs(x_rec - x_ref)))
    assert jnp.allclose(fvu, fvu_ref, atol=1e-5, rtol=1e-3), (float(fvu), float(fvu_ref))

    print("KERNEL_OK")
</pallas_src>

<mosaic_0001>
module attributes {stable_mosaic.version = 11 : i64} {
  func.func @_sae_kernel(%arg0: i32, %arg1: memref<8x128xf32, #tpu.memory_space<vmem>>, %arg2: memref<128x128xbf16, #tpu.memory_space<vmem>>, %arg3: memref<1x128xf32, #tpu.memory_space<vmem>>, %arg4: memref<128x128xbf16, #tpu.memory_space<vmem>>, %arg5: memref<1x128xf32, #tpu.memory_space<vmem>>, %arg6: memref<8x128xf32, #tpu.memory_space<vmem>>) attributes {dimension_semantics = [#tpu.dimension_semantics<parallel>], iteration_bounds = array<i64: 1>, scalar_prefetch = 0 : i64, scratch_operands = 0 : i64, tpu.core_type = #tpu.core_type<tc>, window_params = [{transform_indices = @transform_0, window_bounds = array<i64: 8, 128>}, {pipeline_mode = #tpu.pipeline_mode<synchronous>, transform_indices = @transform_1, window_bounds = array<i64: 128, 128>}, {pipeline_mode = #tpu.pipeline_mode<synchronous>, transform_indices = @transform_2, window_bounds = array<i64: 1, 128>}, {pipeline_mode = #tpu.pipeline_mode<synchronous>, transform_indices = @transform_3, window_bounds = array<i64: 128, 128>}, {pipeline_mode = #tpu.pipeline_mode<synchronous>, transform_indices = @transform_4, window_bounds = array<i64: 1, 128>}, {transform_indices = @transform_5, window_bounds = array<i64: 8, 128>}]} {
    %c0 = arith.constant 0 : index
    %c0_0 = arith.constant 0 : index
    %0 = vector.load %arg1[%c0, %c0_0] : memref<8x128xf32, #tpu.memory_space<vmem>>, vector<8x128xf32>
    %c0_1 = arith.constant 0 : index
    %c0_2 = arith.constant 0 : index
    %1 = vector.load %arg5[%c0_1, %c0_2] : memref<1x128xf32, #tpu.memory_space<vmem>>, vector<1x128xf32>
    %2 = vector.broadcast %1 : vector<1x128xf32> to vector<8x128xf32>
    %3 = arith.subf %0, %2 : vector<8x128xf32>
    %4 = arith.truncf %3 : vector<8x128xf32> to vector<8x128xbf16>
    %c0_3 = arith.constant 0 : index
    %c0_4 = arith.constant 0 : index
    %5 = vector.load %arg2[%c0_3, %c0_4] : memref<128x128xbf16, #tpu.memory_space<vmem>>, vector<128x128xbf16>
    %cst = arith.constant dense<0.000000e+00> : vector<8x128xf32>
    %6 = tpu.matmul %4, %5, %cst {dimension_numbers = #tpu.dot_dimension_numbers<[1], [0], [0], [1], [0, 0, 1, 1], [], []>} : vector<8x128xbf16>, vector<128x128xbf16>, vector<8x128xf32> -> vector<8x128xf32>
    %c0_5 = arith.constant 0 : index
    %c0_6 = arith.constant 0 : index
    %7 = vector.load %arg3[%c0_5, %c0_6] : memref<1x128xf32, #tpu.memory_space<vmem>>, vector<1x128xf32>
    %8 = vector.broadcast %7 : vector<1x128xf32> to vector<8x128xf32>
    %9 = arith.addf %6, %8 : vector<8x128xf32>
    %cst_7 = arith.constant 0.000000e+00 : f32
    %10 = vector.broadcast %cst_7 : f32 to vector<8x128xf32>
    %11 = arith.maximumf %9, %10 : vector<8x128xf32>
    %cst_8 = arith.constant 0.000000e+00 : f32
    %12 = vector.broadcast %cst_8 : f32 to vector<8x1xf32>
    %c0_i32 = arith.constant 0 : i32
    %cst_9 = arith.constant dense<0xFF800000> : vector<8xf32>
    %13 = vector.multi_reduction <maximumf>, %11, %cst_9 [1] : vector<8x128xf32> to vector<8xf32>
    %14 = vector.shape_cast %13 : vector<8xf32> to vector<8x1xf32>
    %15 = vector.broadcast %14 : vector<8x1xf32> to vector<8x128xf32>
    %16 = arith.cmpf oeq, %11, %15 : vector<8x128xf32>
    %cst_10 = arith.constant 0xFF800000 : f32
    %17 = vector.broadcast %cst_10 : f32 to vector<8x128xf32>
    %18 = arith.select %16, %17, %11 : vector<8x128xi1>, vector<8x128xf32>
    %c1_i32 = arith.constant 1 : i32
    %cst_11 = arith.constant dense<0xFF800000> : vector<8xf32>
    %19 = vector.multi_reduction <maximumf>, %18, %cst_11 [1] : vector<8x128xf32> to vector<8xf32>
    %20 = vector.shape_cast %19 : vector<8xf32> to vector<8x1xf32>
    %21 = vector.broadcast %20 : vector<8x1xf32> to vector<8x128xf32>
    %22 = arith.cmpf oeq, %18, %21 : vector<8x128xf32>
    %cst_12 = arith.constant 0xFF800000 : f32
    %23 = vector.broadcast %cst_12 : f32 to vector<8x128xf32>
    %24 = arith.select %22, %23, %18 : vector<8x128xi1>, vector<8x128xf32>
    %c2_i32 = arith.constant 2 : i32
    %cst_13 = arith.constant dense<0xFF800000> : vector<8xf32>
    %25 = vector.multi_reduction <maximumf>, %24, %cst_13 [1] : vector<8x128xf32> to vector<8xf32>
    %26 = vector.shape_cast %25 : vector<8xf32> to vector<8x1xf32>
    %27 = vector.broadcast %26 : vector<8x1xf32> to vector<8x128xf32>
    %28 = arith.cmpf oeq, %24, %27 : vector<8x128xf32>
    %cst_14 = arith.constant 0xFF800000 : f32
    %29 = vector.broadcast %cst_14 : f32 to vector<8x128xf32>
    %30 = arith.select %28, %29, %24 : vector<8x128xi1>, vector<8x128xf32>
    %c3_i32 = arith.constant 3 : i32
    %cst_15 = arith.constant dense<0xFF800000> : vector<8xf32>
    %31 = vector.multi_reduction <maximumf>, %30, %cst_15 [1] : vector<8x128xf32> to vector<8xf32>
    %32 = vector.shape_cast %31 : vector<8xf32> to vector<8x1xf32>
    %33 = vector.broadcast %32 : vector<8x1xf32> to vector<8x128xf32>
    %34 = arith.cmpf oeq, %30, %33 : vector<8x128xf32>
    %cst_16 = arith.constant 0xFF800000 : f32
    %35 = vector.broadcast %cst_16 : f32 to vector<8x128xf32>
    %36 = arith.select %34, %35, %30 : vector<8x128xi1>, vector<8x128xf32>
    %c4_i32 = arith.constant 4 : i32
    %cst_17 = arith.constant dense<0xFF800000> : vector<8xf32>
    %37 = vector.multi_reduction <maximumf>, %36, %cst_17 [1] : vector<8x128xf32> to vector<8xf32>
    %38 = vector.shape_cast %37 : vector<8xf32> to vector<8x1xf32>
    %39 = vector.broadcast %38 : vector<8x1xf32> to vector<8x128xf32>
    %40 = arith.cmpf oeq, %36, %39 : vector<8x128xf32>
    %cst_18 = arith.constant 0xFF800000 : f32
    %41 = vector.broadcast %cst_18 : f32 to vector<8x128xf32>
    %42 = arith.select %40, %41, %36 : vector<8x128xi1>, vector<8x128xf32>
    %c5_i32 = arith.constant 5 : i32
    %cst_19 = arith.constant dense<0xFF800000> : vector<8xf32>
    %43 = vector.multi_reduction <maximumf>, %42, %cst_19 [1] : vector<8x128xf32> to vector<8xf32>
    %44 = vector.shape_cast %43 : vector<8xf32> to vector<8x1xf32>
    %45 = vector.broadcast %44 : vector<8x1xf32> to vector<8x128xf32>
    %46 = arith.cmpf oeq, %42, %45 : vector<8x128xf32>
    %cst_20 = arith.constant 0xFF800000 : f32
    %47 = vector.broadcast %cst_20 : f32 to vector<8x128xf32>
    %48 = arith.select %46, %47, %42 : vector<8x128xi1>, vector<8x128xf32>
    %c6_i32 = arith.constant 6 : i32
    %cst_21 = arith.constant dense<0xFF800000> : vector<8xf32>
    %49 = vector.multi_reduction <maximumf>, %48, %cst_21 [1] : vector<8x128xf32> to vector<8xf32>
    %50 = vector.shape_cast %49 : vector<8xf32> to vector<8x1xf32>
    %51 = vector.broadcast %50 : vector<8x1xf32> to vector<8x128xf32>
    %52 = arith.cmpf oeq, %48, %51 : vector<8x128xf32>
    %cst_22 = arith.constant 0xFF800000 : f32
    %53 = vector.broadcast %cst_22 : f32 to vector<8x128xf32>
    %54 = arith.select %52, %53, %48 : vector<8x128xi1>, vector<8x128xf32>
    %c7_i32 = arith.constant 7 : i32
    %cst_23 = arith.constant dense<0xFF800000> : vector<8xf32>
    %55 = vector.multi_reduction <maximumf>, %54, %cst_23 [1] : vector<8x128xf32> to vector<8xf32>
    %56 = vector.shape_cast %55 : vector<8xf32> to vector<8x1xf32>
    %57 = vector.broadcast %56 : vector<8x1xf32> to vector<8x128xf32>
    %58 = arith.cmpf oeq, %54, %57 : vector<8x128xf32>
    %cst_24 = arith.constant 0xFF800000 : f32
    %59 = vector.broadcast %cst_24 : f32 to vector<8x128xf32>
    %60 = arith.select %58, %59, %54 : vector<8x128xi1>, vector<8x128xf32>
    %61 = vector.broadcast %56 : vector<8x1xf32> to vector<8x128xf32>
    %62 = arith.cmpf oge, %11, %61 : vector<8x128xf32>
    %cst_25 = arith.constant 0.000000e+00 : f32
    %63 = vector.broadcast %cst_25 : f32 to vector<8x128xf32>
    %64 = arith.cmpf ogt, %11, %63 : vector<8x128xf32>
    %65 = arith.andi %62, %64 : vector<8x128xi1>
    %cst_26 = arith.constant 0.000000e+00 : f32
    %66 = vector.broadcast %cst_26 : f32 to vector<8x128xf32>
    %67 = arith.select %65, %11, %66 : vector<8x128xi1>, vector<8x128xf32>
    %68 = arith.truncf %67 : vector<8x128xf32> to vector<8x128xbf16>
    %c0_27 = arith.constant 0 : index
    %c0_28 = arith.constant 0 : index
    %69 = vector.load %arg4[%c0_27, %c0_28] : memref<128x128xbf16, #tpu.memory_space<vmem>>, vector<128x128xbf16>
    %cst_29 = arith.constant dense<0.000000e+00> : vector<8x128xf32>
    %70 = tpu.matmul %68, %69, %cst_29 {dimension_numbers = #tpu.dot_dimension_numbers<[1], [0], [0], [1], [0, 0, 1, 1], [], []>} : vector<8x128xbf16>, vector<128x128xbf16>, vector<8x128xf32> -> vector<8x128xf32>
    %71 = vector.broadcast %1 : vector<1x128xf32> to vector<8x128xf32>
    %72 = arith.addf %70, %71 : vector<8x128xf32>
    %c0_30 = arith.constant 0 : index
    %c0_31 = arith.constant 0 : index
    %73 = vector.load %arg6[%c0_30, %c0_31] : memref<8x128xf32, #tpu.memory_space<vmem>>, vector<8x128xf32>
    tpu.vector_store %arg6[%c0_30, %c0_31], %72 {strides = array<i32>} : memref<8x128xf32, #tpu.memory_space<vmem>>, vector<8x128xf32>,
    return
  }
  func.func @transform_0(%arg0: i32) -> (i32, i32) {
    %c0_i32 = arith.constant 0 : i32
    %c0_i32_0 = arith.constant 0 : i32
    return %arg0, %c0_i32 : i32, i32
  }
  func.func @transform_1(%arg0: i32) -> (i32, i32) {
    %c0_i32 = arith.constant 0 : i32
    %c0_i32_0 = arith.constant 0 : i32
    %c0_i32_1 = arith.constant 0 : i32
    return %c0_i32, %c0_i32_0 : i32, i32
  }
  func.func @transform_2(%arg0: i32) -> (i32, i32) {
    %c0_i32 = arith.constant 0 : i32
    %c0_i32_0 = arith.constant 0 : i32
    %c0_i32_1 = arith.constant 0 : i32
    return %c0_i32, %c0_i32_0 : i32, i32
  }
  func.func @transform_3(%arg0: i32) -> (i32, i32) {
    %c0_i32 = arith.constant 0 : i32
    %c0_i32_0 = arith.constant 0 : i32
    %c0_i32_1 = arith.constant 0 : i32
    return %c0_i32, %c0_i32_0 : i32, i32
  }
  func.func @transform_4(%arg0: i32) -> (i32, i32) {
    %c0_i32 = arith.constant 0 : i32
    %c0_i32_0 = arith.constant 0 : i32
    %c0_i32_1 = arith.constant 0 : i32
    return %c0_i32, %c0_i32_0 : i32, i32
  }
  func.func @transform_5(%arg0: i32) -> (i32, i32) {
    %c0_i32 = arith.constant 0 : i32
    %c0_i32_0 = arith.constant 0 : i32
    return %arg0, %c0_i32 : i32, i32
  }
}

module attributes {stable_mosaic.version = 11 : i64} {
  func.func @_sae_kernel(%arg0: i32, %arg1: memref<8x128xf32, #tpu.memory_space<vmem>>, %arg2: memref<128x128xbf16, #tpu.memory_space<vmem>>, %arg3: memref<1x128xf32, #tpu.memory_space<vmem>>, %arg4: memref<128x128xbf16, #tpu.memory_space<vmem>>, %arg5: memref<1x128xf32, #tpu.memory_space<vmem>>, %arg6: memref<8x128xf32, #tpu.memory_space<vmem>>) attributes {dimension_semantics = [#tpu.dimension_semantics<parallel>], iteration_bounds = array<i64: 1>, scalar_prefetch = 0 : i64, scratch_operands = 0 : i64, tpu.core_type = #tpu.core_type<tc>, window_params = [{transform_indices = @transform_0, window_bounds = array<i64: 8, 128>}, {pipeline_mode = #tpu.pipeline_mode<synchronous>, transform_indices = @transform_1, window_bounds = array<i64: 128, 128>}, {pipeline_mode = #tpu.pipeline_mode<synchronous>, transform_indices = @transform_2, window_bounds = array<i64: 1, 128>}, {pipeline_mode = #tpu.pipeline_mode<synchronous>, transform_indices = @transform_3, window_bounds = array<i64: 128, 128>}, {pipeline_mode = #tpu.pipeline_mode<synchronous>, transform_indices = @transform_4, window_bounds = array<i64: 1, 128>}, {transform_indices = @transform_5, window_bounds = array<i64: 8, 128>}]} {
    %c0 = arith.constant 0 : index
    %c0_0 = arith.constant 0 : index
    %0 = vector.load %arg1[%c0, %c0_0] : memref<8x128xf32, #tpu.memory_space<vmem>>, vector<8x128xf32>
    %c0_1 = arith.constant 0 : index
    %c0_2 = arith.constant 0 : index
    %1 = vector.load %arg5[%c0_1, %c0_2] : memref<1x128xf32, #tpu.memory_space<vmem>>, vector<1x128xf32>
    %2 = vector.broadcast %1 : vector<1x128xf32> to vector<8x128xf32>
    %3 = arith.subf %0, %2 : vector<8x128xf32>
    %4 = arith.truncf %3 : vector<8x128xf32> to vector<8x128xbf16>
    %c0_3 = arith.constant 0 : index
    %c0_4 = arith.constant 0 : index
    %5 = vector.load %arg2[%c0_3, %c0_4] : memref<128x128xbf16, #tpu.memory_space<vmem>>, vector<128x128xbf16>
    %cst = arith.constant dense<0.000000e+00> : vector<8x128xf32>
    %6 = tpu.matmul %4, %5, %cst {dimension_numbers = #tpu.dot_dimension_numbers<[1], [0], [0], [1], [0, 0, 1, 1], [], []>} : vector<8x128xbf16>, vector<128x128xbf16>, vector<8x128xf32> -> vector<8x128xf32>
    %c0_5 = arith.constant 0 : index
    %c0_6 = arith.constant 0 : index
    %7 = vector.load %arg3[%c0_5, %c0_6] : memref<1x128xf32, #tpu.memory_space<vmem>>, vector<1x128xf32>
    %8 = vector.broadcast %7 : vector<1x128xf32> to vector<8x128xf32>
    %9 = arith.addf %6, %8 : vector<8x128xf32>
    %cst_7 = arith.constant 0.000000e+00 : f32
    %10 = vector.broadcast %cst_7 : f32 to vector<8x128xf32>
    %11 = arith.maximumf %9, %10 : vector<8x128xf32>
    %cst_8 = arith.constant 0.000000e+00 : f32
    %12 = vector.broadcast %cst_8 : f32 to vector<8x1xf32>
    %c0_i32 = arith.constant 0 : i32
    %cst_9 = arith.constant dense<0xFF800000> : vector<8xf32>
    %13 = vector.multi_reduction <maximumf>, %11, %cst_9 [1] : vector<8x128xf32> to vector<8xf32>
    %14 = vector.shape_cast %13 : vector<8xf32> to vector<8x1xf32>
    %15 = vector.broadcast %14 : vector<8x1xf32> to vector<8x128xf32>
    %16 = arith.cmpf oeq, %11, %15 : vector<8x128xf32>
    %cst_10 = arith.constant 0xFF800000 : f32
    %17 = vector.broadcast %cst_10 : f32 to vector<8x128xf32>
    %18 = arith.select %16, %17, %11 : vector<8x128xi1>, vector<8x128xf32>
    %c1_i32 = arith.constant 1 : i32
    %cst_11 = arith.constant dense<0xFF800000> : vector<8xf32>
    %19 = vector.multi_reduction <maximumf>, %18, %cst_11 [1] : vector<8x128xf32> to vector<8xf32>
    %20 = vector.shape_cast %19 : vector<8xf32> to vector<8x1xf32>
    %21 = vector.broadcast %20 : vector<8x1xf32> to vector<8x128xf32>
    %22 = arith.cmpf oeq, %18, %21 : vector<8x128xf32>
    %cst_12 = arith.constant 0xFF800000 : f32
    %23 = vector.broadcast %cst_12 : f32 to vector<8x128xf32>
    %24 = arith.select %22, %23, %18 : vector<8x128xi1>, vector<8x128xf32>
    %c2_i32 = arith.constant 2 : i32
    %cst_13 = arith.constant dense<0xFF800000> : vector<8xf32>
    %25 = vector.multi_reduction <maximumf>, %24, %cst_13 [1] : vector<8x128xf32> to vector<8xf32>
    %26 = vector.shape_cast %25 : vector<8xf32> to vector<8x1xf32>
    %27 = vector.broadcast %26 : vector<8x1xf32> to vector<8x128xf32>
    %28 = arith.cmpf oeq, %24, %27 : vector<8x128xf32>
    %cst_14 = arith.constant 0xFF800000 : f32
    %29 = vector.broadcast %cst_14 : f32 to vector<8x128xf32>
    %30 = arith.select %28, %29, %24 : vector<8x128xi1>, vector<8x128xf32>
    %c3_i32 = arith.constant 3 : i32
    %cst_15 = arith.constant dense<0xFF800000> : vector<8xf32>
    %31 = vector.multi_reduction <maximumf>, %30, %cst_15 [1] : vector<8x128xf32> to vector<8xf32>
    %32 = vector.shape_cast %31 : vector<8xf32> to vector<8x1xf32>
    %33 = vector.broadcast %32 : vector<8x1xf32> to vector<8x128xf32>
    %34 = arith.cmpf oeq, %30, %33 : vector<8x128xf32>
    %cst_16 = arith.constant 0xFF800000 : f32
    %35 = vector.broadcast %cst_16 : f32 to vector<8x128xf32>
    %36 = arith.select %34, %35, %30 : vector<8x128xi1>, vector<8x128xf32>
    %c4_i32 = arith.constant 4 : i32
    %cst_17 = arith.constant dense<0xFF800000> : vector<8xf32>
    %37 = vector.multi_reduction <maximumf>, %36, %cst_17 [1] : vector<8x128xf32> to vector<8xf32>
    %38 = vector.shape_cast %37 : vector<8xf32> to vector<8x1xf32>
    %39 = vector.broadcast %38 : vector<8x1xf32> to vector<8x128xf32>
    %40 = arith.cmpf oeq, %36, %39 : vector<8x128xf32>
    %cst_18 = arith.constant 0xFF800000 : f32
    %41 = vector.broadcast %cst_18 : f32 to vector<8x128xf32>
    %42 = arith.select %40, %41, %36 : vector<8x128xi1>, vector<8x128xf32>
    %c5_i32 = arith.constant 5 : i32
    %cst_19 = arith.constant dense<0xFF800000> : vector<8xf32>
    %43 = vector.multi_reduction <maximumf>, %42, %cst_19 [1] : vector<8x128xf32> to vector<8xf32>
    %44 = vector.shape_cast %43 : vector<8xf32> to vector<8x1xf32>
    %45 = vector.broadcast %44 : vector<8x1xf32> to vector<8x128xf32>
    %46 = arith.cmpf oeq, %42, %45 : vector<8x128xf32>
    %cst_20 = arith.constant 0xFF800000 : f32
    %47 = vector.broadcast %cst_20 : f32 to vector<8x128xf32>
    %48 = arith.select %46, %47, %42 : vector<8x128xi1>, vector<8x128xf32>
    %c6_i32 = arith.constant 6 : i32
    %cst_21 = arith.constant dense<0xFF800000> : vector<8xf32>
    %49 = vector.multi_reduction <maximumf>, %48, %cst_21 [1] : vector<8x128xf32> to vector<8xf32>
    %50 = vector.shape_cast %49 : vector<8xf32> to vector<8x1xf32>
    %51 = vector.broadcast %50 : vector<8x1xf32> to vector<8x128xf32>
    %52 = arith.cmpf oeq, %48, %51 : vector<8x128xf32>
    %cst_22 = arith.constant 0xFF800000 : f32
    %53 = vector.broadcast %cst_22 : f32 to vector<8x128xf32>
    %54 = arith.select %52, %53, %48 : vector<8x128xi1>, vector<8x128xf32>
    %c7_i32 = arith.constant 7 : i32
    %cst_23 = arith.constant dense<0xFF800000> : vector<8xf32>
    %55 = vector.multi_reduction <maximumf>, %54, %cst_23 [1] : vector<8x128xf32> to vector<8xf32>
    %56 = vector.shape_cast %55 : vector<8xf32> to vector<8x1xf32>
    %57 = vector.broadcast %56 : vector<8x1xf32> to vector<8x128xf32>
    %58 = arith.cmpf oeq, %54, %57 : vector<8x128xf32>
    %cst_24 = arith.constant 0xFF800000 : f32
    %59 = vector.broadcast %cst_24 : f32 to vector<8x128xf32>
    %60 = arith.select %58, %59, %54 : vector<8x128xi1>, vector<8x128xf32>
    %61 = vector.broadcast %56 : vector<8x1xf32> to vector<8x128xf32>
    %62 = arith.cmpf oge, %11, %61 : vector<8x128xf32>
    %cst_25 = arith.constant 0.000000e+00 : f32
    %63 = vector.broadcast %cst_25 : f32 to vector<8x128xf32>
    %64 = arith.cmpf ogt, %11, %63 : vector<8x128xf32>
    %65 = arith.andi %62, %64 : vector<8x128xi1>
    %cst_26 = arith.constant 0.000000e+00 : f32
    %66 = vector.broadcast %cst_26 : f32 to vector<8x128xf32>
    %67 = arith.select %65, %11, %66 : vector<8x128xi1>, vector<8x128xf32>
    %68 = arith.truncf %67 : vector<8x128xf32> to vector<8x128xbf16>
    %c0_27 = arith.constant 0 : index
    %c0_28 = arith.constant 0 : index
    %69 = vector.load %arg4[%c0_27, %c0_28] : memref<128x128xbf16, #tpu.memory_space<vmem>>, vector<128x128xbf16>
    %cst_29 = arith.constant dense<0.000000e+00> : vector<8x128xf32>
    %70 = tpu.matmul %68, %69, %cst_29 {dimension_numbers = #tpu.dot_dimension_numbers<[1], [0], [0], [1], [0, 0, 1, 1], [], []>} : vector<8x128xbf16>, vector<128x128xbf16>, vector<8x128xf32> -> vector<8x128xf32>
    %71 = vector.broadcast %1 : vector<1x128xf32> to vector<8x128xf32>
    %72 = arith.addf %70, %71 : vector<8x128xf32>
    %c0_30 = arith.constant 0 : index
    %c0_31 = arith.constant 0 : index
    %73 = vector.load %arg6[%c0_30, %c0_31] : memref<8x128xf32, #tpu.memory_space<vmem>>, vector<8x128xf32>
    tpu.vector_store %arg6[%c0_30, %c0_31], %72 {strides = array<i32>} : memref<8x128xf32, #tpu.memory_space<vmem>>, vector<8x128xf32>,
    return
  }
  func.func @transform_0(%arg0: i32) -> (i32, i32) {
    %c0_i32 = arith.constant 0 : i32
    %c0_i32_0 = arith.constant 0 : i32
    return %arg0, %c0_i32 : i32, i32
  }
  func.func @transform_1(%arg0: i32) -> (i32, i32) {
    %c0_i32 = arith.constant 0 : i32
    %c0_i32_0 = arith.constant 0 : i32
    %c0_i32_1 = arith.constant 0 : i32
    return %c0_i32, %c0_i32_0 : i32, i32
  }
  func.func @transform_2(%arg0: i32) -> (i32, i32) {
    %c0_i32 = arith.constant 0 : i32
    %c0_i32_0 = arith.constant 0 : i32
    %c0_i32_1 = arith.constant 0 : i32
    return %c0_i32, %c0_i32_0 : i32, i32
  }
  func.func @transform_3(%arg0: i32) -> (i32, i32) {
    %c0_i32 = arith.constant 0 : i32
    %c0_i32_0 = arith.constant 0 : i32
    %c0_i32_1 = arith.constant 0 : i32
    return %c0_i32, %c0_i32_0 : i32, i32
  }
  func.func @transform_4(%arg0: i32) -> (i32, i32) {
    %c0_i32 = arith.constant 0 : i32
    %c0_i32_0 = arith.constant 0 : i32
    %c0_i32_1 = arith.constant 0 : i32
    return %c0_i32, %c0_i32_0 : i32, i32
  }
  func.func @transform_5(%arg0: i32) -> (i32, i32) {
    %c0_i32 = arith.constant 0 : i32
    %c0_i32_0 = arith.constant 0 : i32
    return %arg0, %c0_i32 : i32, i32
  }
}

</mosaic_0001>

<llo_original>
// kernel: tpu_custom_call.1
$region0: #{tpu_custom_call.1}
  #allocation0 [shape = 'u32[]', space=smem, size = 0x4, offset = 0x4, fixed_abs, tag = 'smem constant byte address 0x4 - core index']
  #allocation1 [shape = 'u32[144,128]{1,0:T(1,128)}', space=vmem, size = 0x12000, scoped, tag = 'internal scratch']
  %s0 = inlined_call_operand.hbm [shape: f32[8,128], index: 0, kind: input, shape index: {}]
  %s1 = inlined_call_operand.hbm [shape: bf16[128,128], index: 1, kind: input, shape index: {}]
  %s2 = inlined_call_operand.vmem [shape: f32[1,128], index: 2, kind: input, shape index: {}]
  %s3 = inlined_call_operand.hbm [shape: bf16[128,128], index: 3, kind: input, shape index: {}]
  %s4 = inlined_call_operand.vmem [shape: f32[1,128], index: 4, kind: input, shape index: {}]
  %s5 = inlined_call_operand.hbm [shape: f32[8,128], index: 5, kind: output, shape index: {}]
  %s6 = sld [smem:[#allocation0]]
  $region42: #{tpu_custom_call.1} parent=0
    _
  %s8 = ssub.s32 1, %s6
  %s9 = scalar_select 0, %s8, %s6
  $region1: #{tpu_custom_call.1} parent=0
    #allocation2 [shape = 'u8[4096]{0}', space=vmem, size = 0x1000, scoped, tag = 'input window, operand 0, single buffered']
    #allocation3 [shape = 's32[1]{0}', space=sflag, size = 0x4, scoped, tag = 'scoped memory for tpu_custom_call.1']
    #allocation4 [shape = 's32[1]{0}', space=sflag, size = 0x4, scoped, tag = 'scoped memory for tpu_custom_call.1']
    #allocation5 [shape = 'u8[32768]{0}', space=vmem, size = 0x8000, scoped, tag = 'input window, operand 1, single buffered']
    #allocation6 [shape = 's32[1]{0}', space=sflag, size = 0x4, scoped, tag = 'scoped memory for tpu_custom_call.1']
    #allocation7 [shape = 'u8[32768]{0}', space=vmem, size = 0x8000, scoped, tag = 'input window, operand 3, single buffered']
    #allocation8 [shape = 'u8[4096]{0}', space=vmem, size = 0x1000, scoped, tag = 'output window, operand 0, single buffered']
    %10 = vsyncpa [#allocation3], 0
    %11 = vsyncpa [#allocation6], 0
    %12 = vsyncpa [#allocation4], 0
    // Predicated region
    $region2: #{tpu_custom_call.1} parent=1 // pred_check
      _
    $region3: #{tpu_custom_call.1} parent=1 // pred_check_branch
      %14 = sbr.rel (0) target = $region5
    $region4: #{tpu_custom_call.1} parent=1 // pred_region
      %s16 = ssub.s32 128, 128
      %17 = vsyncadd [#allocation3], %s16
      %s19 = sshll.u32 [#allocation2], 4
      %s20 = int_to_ptr.vmem [resolvable:$true] %s19
      %22 = dma.hbm_to_vmem [thread:$0]  %s0, 128, %s20, [#allocation3]
    $region5: #{tpu_custom_call.1} parent=1 // pred_fallthru
      _
    // Predicated region
    $region6: #{tpu_custom_call.1} parent=1 // pred_check
      _
    $region7: #{tpu_custom_call.1} parent=1 // pred_check_branch
      %24 = sbr.rel (0) target = $region9
    $region8: #{tpu_custom_call.1} parent=1 // pred_region
      %s26 = ssub.s32 1024, 1024
      %27 = vsyncadd [#allocation6], %s26
      %s28 = sshll.u32 [#allocation5], 4
      %s29 = int_to_ptr.vmem [resolvable:$true] %s28
      %34 = dma.hbm_to_vmem [thread:$0]  %s1, 1024, %s29, [#allocation6], 64, 64, 4
    $region9: #{tpu_custom_call.1} parent=1 // pred_fallthru
      _
    // Predicated region
    $region10: #{tpu_custom_call.1} parent=1 // pred_check
      _
    $region11: #{tpu_custom_call.1} parent=1 // pred_check_branch
      %36 = sbr.rel (0) target = $region13
    $region12: #{tpu_custom_call.1} parent=1 // pred_region
      _
    $region13: #{tpu_custom_call.1} parent=1 // pred_fallthru
      _
    // Predicated region
    $region14: #{tpu_custom_call.1} parent=1 // pred_check
      _
    $region15: #{tpu_custom_call.1} parent=1 // pred_check_branch
      %38 = sbr.rel (0) target = $region17
    $region16: #{tpu_custom_call.1} parent=1 // pred_region
      %s40 = ssub.s32 1024, 1024
      %41 = vsyncadd [#allocation6], %s40
      %s42 = sshll.u32 [#allocation7], 4
      %s43 = int_to_ptr.vmem [resolvable:$true] %s42
      %48 = dma.hbm_to_vmem [thread:$0]  %s3, 1024, %s43, [#allocation6], 64, 64, 4
    $region17: #{tpu_custom_call.1} parent=1 // pred_fallthru
      _
    // Predicated region
    $region18: #{tpu_custom_call.1} parent=1 // pred_check
      _
    $region19: #{tpu_custom_call.1} parent=1 // pred_check_branch
      %50 = sbr.rel (0) target = $region21
    $region20: #{tpu_custom_call.1} parent=1 // pred_region
      _
    $region21: #{tpu_custom_call.1} parent=1 // pred_fallthru
      _
    // Predicated region
    $region22: #{tpu_custom_call.1} parent=1 // pred_check
      _
    $region23: #{tpu_custom_call.1} parent=1 // pred_check_branch
      %52 = sbr.rel (0) target = $region25
    $region24: #{tpu_custom_call.1} parent=1 // pred_region
      %53 = dma.done [#allocation3], 128
    $region25: #{tpu_custom_call.1} parent=1 // pred_fallthru
      _
    // Predicated region
    $region26: #{tpu_custom_call.1} parent=1 // pred_check
      _
    $region27: #{tpu_custom_call.1} parent=1 // pred_check_branch
      %55 = sbr.rel (0) target = $region29
    $region28: #{tpu_custom_call.1} parent=1 // pred_region
      %56 = dma.done [#allocation6], 1024
    $region29: #{tpu_custom_call.1} parent=1 // pred_fallthru
      _
    // Predicated region
    $region30: #{tpu_custom_call.1} parent=1 // pred_check
      _
    $region31: #{tpu_custom_call.1} parent=1 // pred_check_branch
      %58 = sbr.rel (0) target = $region33
    $region32: #{tpu_custom_call.1} parent=1 // pred_region
      %59 = dma.done [#allocation6], 1024
    $region33: #{tpu_custom_call.1} parent=1 // pred_fallthru
      _
    %v61 = vld [vmem:[#allocation2] sm:$0xff]
    %v62 = vld [vmem:[%s4] sm:$0x1]
    %v64 = vlaneseq
    %v65 = vshrl.u32 %v64, 7
    %v66 = vsub.s32 0, %v65
    %v67 = vrot.slane %v62, %v66
    %v69 = vsub.f32 %v61, %v67
    %v70 = vpack.c.bf16 %v69, %v69
    %v71 = vld [vmem:[#allocation5] sm:$0xf]
    %v72 = vld [vmem:[#allocation5 + $0x4] sm:$0xf]
    %v73 = vld [vmem:[#allocation5 + $0x8] sm:$0xf]
    %v74 = vld [vmem:[#allocation5 + $0xc] sm:$0xf]
    %v75 = vld [vmem:[#allocation5 + $0x10] sm:$0xf]
    %v76 = vld [vmem:[#allocation5 + $0x14] sm:$0xf]
    %v77 = vld [vmem:[#allocation5 + $0x18] sm:$0xf]
    %v78 = vld [vmem:[#allocation5 + $0x1c] sm:$0xf]
    %v79 = vld [vmem:[#allocation5 + $0x20] sm:$0xf]
    %v80 = vld [vmem:[#allocation5 + $0x24] sm:$0xf]
    %v81 = vld [vmem:[#allocation5 + $0x28] sm:$0xf]
    %v82 = vld [vmem:[#allocation5 + $0x2c] sm:$0xf]
    %v83 = vld [vmem:[#allocation5 + $0x30] sm:$0xf]
    %v84 = vld [vmem:[#allocation5 + $0x34] sm:$0xf]
    %v85 = vld [vmem:[#allocation5 + $0x38] sm:$0xf]
    %v86 = vld [vmem:[#allocation5 + $0x3c] sm:$0xf]
    %v87 = vld [vmem:[%s2] sm:$0x1]
    %v89 = vlaneseq
    %v90 = vshrl.u32 %v89, 7
    %v91 = vsub.s32 0, %v90
    %v92 = vrot.slane %v87, %v91
    %v110 = vunpack.c.l.b16 %v71
    %v111 = vunpack.c.l.b16 %v72
    %v112 = vunpack.c.l.b16 %v73
    %v113 = vunpack.c.l.b16 %v74
    %v114 = vunpack.c.l.b16 %v75
    %v115 = vunpack.c.l.b16 %v76
    %v116 = vunpack.c.l.b16 %v77
    %v117 = vunpack.c.l.b16 %v78
    %v118 = vunpack.c.l.b16 %v79
    %v119 = vunpack.c.l.b16 %v80
    %v120 = vunpack.c.l.b16 %v81
    %v121 = vunpack.c.l.b16 %v82
    %v122 = vunpack.c.l.b16 %v83
    %v123 = vunpack.c.l.b16 %v84
    %v124 = vunpack.c.l.b16 %v85
    %v125 = vunpack.c.l.b16 %v86
    %v126 = vpack.c.b16 %v111, %v110
    %v127 = vpack.c.b16 %v113, %v112
    %v128 = vpack.c.b16 %v115, %v114
    %v129 = vpack.c.b16 %v117, %v116
    %v130 = vpack.c.b16 %v119, %v118
    %v131 = vpack.c.b16 %v121, %v120
    %v132 = vpack.c.b16 %v123, %v122
    %v133 = vpack.c.b16 %v125, %v124
    %142 = vmatprep.subr.bf16.mxu0 0
    %143 = vmatpush1.bf16.msra.mxu0 %v126
    %144 = vmatprep.subr.bf16.mxu0 0
    %145 = vmatpush1.bf16.msra.mxu0 %v127
    %146 = vmatprep.subr.bf16.mxu0 0
    %147 = vmatpush1.bf16.msra.mxu0 %v128
    %148 = vmatprep.subr.bf16.mxu0 0
    %149 = vmatpush1.bf16.msra.mxu0 %v129
    %150 = vmatprep.subr.bf16.mxu0 0
    %151 = vmatpush1.bf16.msra.mxu0 %v130
    %152 = vmatprep.subr.bf16.mxu0 0
    %153 = vmatpush1.bf16.msra.mxu0 %v131
    %154 = vmatprep.subr.bf16.mxu0 0
    %155 = vmatpush1.bf16.msra.mxu0 %v132
    %156 = vmatprep.subr.bf16.mxu0 0
    %157 = vmatpush1.bf16.msra.mxu0 %v133
    %158 = vmatprep.subr.bf16.mxu0 0
    %159 = vmatpush1.bf16.msra.mxu0 0
    %160 = vmatprep.subr.bf16.mxu0 0
    %161 = vmatpush1.bf16.msra.mxu0 0
    %162 = vmatprep.subr.bf16.mxu0 0
    %163 = vmatpush1.bf16.msra.mxu0 0
    %164 = vmatprep.subr.bf16.mxu0 0
    %165 = vmatpush1.bf16.msra.mxu0 0
    %166 = vmatprep.subr.bf16.mxu0 0
    %167 = vmatpush1.bf16.msra.mxu0 0
    %168 = vmatprep.subr.bf16.mxu0 0
    %169 = vmatpush1.bf16.msra.mxu0 0
    %170 = vmatprep.subr.bf16.mxu0 0
    %171 = vmatpush1.bf16.msra.mxu0 0
    %172 = vmatprep.subr.bf16.mxu0 0
    %173 = vmatpush1.bf16.msra.mxu0 0
    %174 = vmatprep.mubr.bf16.mxu0 0
    %175 = vmatmul.mubr.bf16.gmra.mrb[0].mxu0 %v70
    %v176 = vpop.f32.mrb[0].mxu0
    %v177 = vadd.f32 %v92, %v176
    %v178 = vpop.f32.mrb[0].mxu0
    %v179 = vpop.f32.mrb[0].mxu0
    %v180 = vpop.f32.mrb[0].mxu0
    %181 = vdwg.mxu0
    %v182 = vmax.f32 %v177, 0.0
    %183 = vmax.xlane.f32.xlu0 %v182
    %v184 = vpop.xlane.xlu0 %183
    %vm185 = vcmp.eq.f32.partialorder %v182, %v184
    %v186 = vsel %vm185, -inf, %v182
    %187 = vmax.xlane.f32.xlu0 %v186
    %v188 = vpop.xlane.xlu0 %187
    %vm189 = vcmp.eq.f32.partialorder %v186, %v188
    %v190 = vsel %vm189, -inf, %v186
    %191 = vmax.xlane.f32.xlu0 %v190
    %v192 = vpop.xlane.xlu0 %191
    %vm193 = vcmp.eq.f32.partialorder %v190, %v192
    %v194 = vsel %vm193, -inf, %v190
    %195 = vmax.xlane.f32.xlu0 %v194
    %v196 = vpop.xlane.xlu0 %195
    %vm197 = vcmp.eq.f32.partialorder %v194, %v196
    %v198 = vsel %vm197, -inf, %v194
    %199 = vmax.xlane.f32.xlu0 %v198
    %v200 = vpop.xlane.xlu0 %199
    %vm201 = vcmp.eq.f32.partialorder %v198, %v200
    %v202 = vsel %vm201, -inf, %v198
    %203 = vmax.xlane.f32.xlu0 %v202
    %v204 = vpop.xlane.xlu0 %203
    %vm205 = vcmp.eq.f32.partialorder %v202, %v204
    %v206 = vsel %vm205, -inf, %v202
    %207 = vmax.xlane.f32.xlu0 %v206
    %v208 = vpop.xlane.xlu0 %207
    %vm209 = vcmp.eq.f32.partialorder %v206, %v208
    %v210 = vsel %vm209, -inf, %v206
    %211 = vmax.xlane.f32.xlu0 %v210
    %v212 = vpop.xlane.xlu0 %211
    %vm213 = vcmp.ge.f32.partialorder %v182, %v212
    %vm214 = vcmp.gt.f32.partialorder %v182, 0.0
    %vm215 = vmand %vm213, %vm214
    %v216 = vsel %vm215, %v182, 0.0
    %v217 = vpack.c.bf16 %v216, %v216
    %v218 = vld [vmem:[#allocation7] sm:$0xf]
    %v219 = vld [vmem:[#allocation7 + $0x4] sm:$0xf]
    %v220 = vld [vmem:[#allocation7 + $0x8] sm:$0xf]
    %v221 = vld [vmem:[#allocation7 + $0xc] sm:$0xf]
    %v222 = vld [vmem:[#allocation7 + $0x10] sm:$0xf]
    %v223 = vld [vmem:[#allocation7 + $0x14] sm:$0xf]
    %v224 = vld [vmem:[#allocation7 + $0x18] sm:$0xf]
    %v225 = vld [vmem:[#allocation7 + $0x1c] sm:$0xf]
    %v226 = vld [vmem:[#allocation7 + $0x20] sm:$0xf]
    %v227 = vld [vmem:[#allocation7 + $0x24] sm:$0xf]
    %v228 = vld [vmem:[#allocation7 + $0x28] sm:$0xf]
    %v229 = vld [vmem:[#allocation7 + $0x2c] sm:$0xf]
    %v230 = vld [vmem:[#allocation7 + $0x30] sm:$0xf]
    %v231 = vld [vmem:[#allocation7 + $0x34] sm:$0xf]
    %v232 = vld [vmem:[#allocation7 + $0x38] sm:$0xf]
    %v233 = vld [vmem:[#allocation7 + $0x3c] sm:$0xf]
    %v250 = vunpack.c.l.b16 %v218
    %v251 = vunpack.c.l.b16 %v219
    %v252 = vunpack.c.l.b16 %v220
    %v253 = vunpack.c.l.b16 %v221
    %v254 = vunpack.c.l.b16 %v222
    %v255 = vunpack.c.l.b16 %v223
    %v256 = vunpack.c.l.b16 %v224
    %v257 = vunpack.c.l.b16 %v225
    %v258 = vunpack.c.l.b16 %v226
    %v259 = vunpack.c.l.b16 %v227
    %v260 = vunpack.c.l.b16 %v228
    %v261 = vunpack.c.l.b16 %v229
    %v262 = vunpack.c.l.b16 %v230
    %v263 = vunpack.c.l.b16 %v231
    %v264 = vunpack.c.l.b16 %v232
    %v265 = vunpack.c.l.b16 %v233
    %v266 = vpack.c.b16 %v251, %v250
    %v267 = vpack.c.b16 %v253, %v252
    %v268 = vpack.c.b16 %v255, %v254
    %v269 = vpack.c.b16 %v257, %v256
    %v270 = vpack.c.b16 %v259, %v258
    %v271 = vpack.c.b16 %v261, %v260
    %v272 = vpack.c.b16 %v263, %v262
    %v273 = vpack.c.b16 %v265, %v264
    %282 = vmatprep.subr.bf16.mxu0 0
    %283 = vmatpush1.bf16.msra.mxu0 %v266
    %284 = vmatprep.subr.bf16.mxu0 0
    %285 = vmatpush1.bf16.msra.mxu0 %v267
    %286 = vmatprep.subr.bf16.mxu0 0
    %287 = vmatpush1.bf16.msra.mxu0 %v268
    %288 = vmatprep.subr.bf16.mxu0 0
    %289 = vmatpush1.bf16.msra.mxu0 %v269
    %290 = vmatprep.subr.bf16.mxu0 0
    %291 = vmatpush1.bf16.msra.mxu0 %v270
    %292 = vmatprep.subr.bf16.mxu0 0
    %293 = vmatpush1.bf16.msra.mxu0 %v271
    %294 = vmatprep.subr.bf16.mxu0 0
    %295 = vmatpush1.bf16.msra.mxu0 %v272
    %296 = vmatprep.subr.bf16.mxu0 0
    %297 = vmatpush1.bf16.msra.mxu0 %v273
    %298 = vmatprep.subr.bf16.mxu0 0
    %299 = vmatpush1.bf16.msra.mxu0 0
    %300 = vmatprep.subr.bf16.mxu0 0
    %301 = vmatpush1.bf16.msra.mxu0 0
    %302 = vmatprep.subr.bf16.mxu0 0
    %303 = vmatpush1.bf16.msra.mxu0 0
    %304 = vmatprep.subr.bf16.mxu0 0
    %305 = vmatpush1.bf16.msra.mxu0 0
    %306 = vmatprep.subr.bf16.mxu0 0
    %307 = vmatpush1.bf16.msra.mxu0 0
    %308 = vmatprep.subr.bf16.mxu0 0
    %309 = vmatpush1.bf16.msra.mxu0 0
    %310 = vmatprep.subr.bf16.mxu0 0
    %311 = vmatpush1.bf16.msra.mxu0 0
    %312 = vmatprep.subr.bf16.mxu0 0
    %313 = vmatpush1.bf16.msra.mxu0 0
    %314 = vmatprep.mubr.bf16.mxu0 0
    %315 = vmatmul.mubr.bf16.gmra.mrb[0].mxu0 %v217
    %v316 = vpop.f32.mrb[0].mxu0
    %v317 = vadd.f32 %v67, %v316
    %v318 = vpop.f32.mrb[0].mxu0
    %v319 = vpop.f32.mrb[0].mxu0
    %v320 = vpop.f32.mrb[0].mxu0
    %321 = vdwg.mxu0
    %322 = vst [vmem:[#allocation8] sm:$0xff] %v317
    // Predicated region
    $region34: #{tpu_custom_call.1} parent=1 // pred_check
      _
    $region35: #{tpu_custom_call.1} parent=1 // pred_check_branch
      %324 = sbr.rel (0) target = $region37
    $region36: #{tpu_custom_call.1} parent=1 // pred_region
      %s326 = ssub.s32 128, 128
      %327 = vsyncadd [#allocation4], %s326
      %s329 = sshll.u32 [#allocation8], 4
      %s330 = int_to_ptr.vmem [resolvable:$true] %s329
      %332 = dma.vmem_to_hbm [thread:$0]  %s330, 128, %s5, [#allocation4]
    $region37: #{tpu_custom_call.1} parent=1 // pred_fallthru
      _
    // Predicated region
    $region38: #{tpu_custom_call.1} parent=1 // pred_check
      _
    $region39: #{tpu_custom_call.1} parent=1 // pred_check_branch
      %334 = sbr.rel (0) target = $region41
    $region40: #{tpu_custom_call.1} parent=1 // pred_region
      %335 = dma.done [#allocation4], 128
    $region41: #{tpu_custom_call.1} parent=1 // pred_fallthru
      _
    %336 = vsyncpa [#allocation3], 1
    %337 = vsyncpa [#allocation6], 1
    %338 = vsyncpa [#allocation4], 1

// kernel: tpu_custom_call.1
$region0: #{tpu_custom_call.1}
  #allocation0 [shape = 'u32[]', space=smem, size = 0x4, offset = 0x4, fixed_abs, tag = 'smem constant byte address 0x4 - core index']
  #allocation1 [shape = 'u32[144,128]{1,0:T(1,128)}', space=vmem, size = 0x12000, scoped, tag = 'internal scratch']
  %s0 = inlined_call_operand.hbm [shape: f32[8,128], index: 0, kind: input, shape index: {}]
  %s1 = inlined_call_operand.hbm [shape: bf16[128,128], index: 1, kind: input, shape index: {}]
  %s2 = inlined_call_operand.vmem [shape: f32[1,128], index: 2, kind: input, shape index: {}]
  %s3 = inlined_call_operand.hbm [shape: bf16[128,128], index: 3, kind: input, shape index: {}]
  %s4 = inlined_call_operand.vmem [shape: f32[1,128], index: 4, kind: input, shape index: {}]
  %s5 = inlined_call_operand.hbm [shape: f32[8,128], index: 5, kind: output, shape index: {}]
  %s6 = sld [smem:[#allocation0]]
  $region42: #{tpu_custom_call.1} parent=0
    _
  %s8 = ssub.s32 1, %s6
  %s9 = scalar_select 0, %s8, %s6
  $region1: #{tpu_custom_call.1} parent=0
    #allocation2 [shape = 'u8[4096]{0}', space=vmem, size = 0x1000, scoped, tag = 'input window, operand 0, single buffered']
    #allocation3 [shape = 's32[1]{0}', space=sflag, size = 0x4, scoped, tag = 'scoped memory for tpu_custom_call.1']
    #allocation4 [shape = 's32[1]{0}', space=sflag, size = 0x4, scoped, tag = 'scoped memory for tpu_custom_call.1']
    #allocation5 [shape = 'u8[32768]{0}', space=vmem, size = 0x8000, scoped, tag = 'input window, operand 1, single buffered']
    #allocation6 [shape = 's32[1]{0}', space=sflag, size = 0x4, scoped, tag = 'scoped memory for tpu_custom_call.1']
    #allocation7 [shape = 'u8[32768]{0}', space=vmem, size = 0x8000, scoped, tag = 'input window, operand 3, single buffered']
    #allocation8 [shape = 'u8[4096]{0}', space=vmem, size = 0x1000, scoped, tag = 'output window, operand 0, single buffered']
    %10 = vsyncpa [#allocation3], 0
    %11 = vsyncpa [#allocation6], 0
    %12 = vsyncpa [#allocation4], 0
    // Predicated region
    $region2: #{tpu_custom_call.1} parent=1 // pred_check
      _
    $region3: #{tpu_custom_call.1} parent=1 // pred_check_branch
      %14 = sbr.rel (0) target = $region5
    $region4: #{tpu_custom_call.1} parent=1 // pred_region
      %s16 = ssub.s32 128, 128
      %17 = vsyncadd [#allocation3], %s16
      %s19 = sshll.u32 [#allocation2], 4
      %s20 = int_to_ptr.vmem [resolvable:$true] %s19
      %22 = dma.hbm_to_vmem [thread:$0]  %s0, 128, %s20, [#allocation3]
    $region5: #{tpu_custom_call.1} parent=1 // pred_fallthru
      _
    // Predicated region
    $region6: #{tpu_custom_call.1} parent=1 // pred_check
      _
    $region7: #{tpu_custom_call.1} parent=1 // pred_check_branch
      %24 = sbr.rel (0) target = $region9
    $region8: #{tpu_custom_call.1} parent=1 // pred_region
      %s26 = ssub.s32 1024, 1024
      %27 = vsyncadd [#allocation6], %s26
      %s28 = sshll.u32 [#allocation5], 4
      %s29 = int_to_ptr.vmem [resolvable:$true] %s28
      %34 = dma.hbm_to_vmem [thread:$0]  %s1, 1024, %s29, [#allocation6], 64, 64, 4
    $region9: #{tpu_custom_call.1} parent=1 // pred_fallthru
      _
    // Predicated region
    $region10: #{tpu_custom_call.1} parent=1 // pred_check
      _
    $region11: #{tpu_custom_call.1} parent=1 // pred_check_branch
      %36 = sbr.rel (0) target = $region13
    $region12: #{tpu_custom_call.1} parent=1 // pred_region
      _
    $region13: #{tpu_custom_call.1} parent=1 // pred_fallthru
      _
    // Predicated region
    $region14: #{tpu_custom_call.1} parent=1 // pred_check
      _
    $region15: #{tpu_custom_call.1} parent=1 // pred_check_branch
      %38 = sbr.rel (0) target = $region17
    $region16: #{tpu_custom_call.1} parent=1 // pred_region
      %s40 = ssub.s32 1024, 1024
      %41 = vsyncadd [#allocation6], %s40
      %s42 = sshll.u32 [#allocation7], 4
      %s43 = int_to_ptr.vmem [resolvable:$true] %s42
      %48 = dma.hbm_to_vmem [thread:$0]  %s3, 1024, %s43, [#allocation6], 64, 64, 4
    $region17: #{tpu_custom_call.1} parent=1 // pred_fallthru
      _
    // Predicated region
    $region18: #{tpu_custom_call.1} parent=1 // pred_check
      _
    $region19: #{tpu_custom_call.1} parent=1 // pred_check_branch
      %50 = sbr.rel (0) target = $region21
    $region20: #{tpu_custom_call.1} parent=1 // pred_region
      _
    $region21: #{tpu_custom_call.1} parent=1 // pred_fallthru
      _
    // Predicated region
    $region22: #{tpu_custom_call.1} parent=1 // pred_check
      _
    $region23: #{tpu_custom_call.1} parent=1 // pred_check_branch
      %52 = sbr.rel (0) target = $region25
    $region24: #{tpu_custom_call.1} parent=1 // pred_region
      %53 = dma.done [#allocation3], 128
    $region25: #{tpu_custom_call.1} parent=1 // pred_fallthru
      _
    // Predicated region
    $region26: #{tpu_custom_call.1} parent=1 // pred_check
      _
    $region27: #{tpu_custom_call.1} parent=1 // pred_check_branch
      %55 = sbr.rel (0) target = $region29
    $region28: #{tpu_custom_call.1} parent=1 // pred_region
      %56 = dma.done [#allocation6], 1024
    $region29: #{tpu_custom_call.1} parent=1 // pred_fallthru
      _
    // Predicated region
    $region30: #{tpu_custom_call.1} parent=1 // pred_check
      _
    $region31: #{tpu_custom_call.1} parent=1 // pred_check_branch
      %58 = sbr.rel (0) target = $region33
    $region32: #{tpu_custom_call.1} parent=1 // pred_region
      %59 = dma.done [#allocation6], 1024
    $region33: #{tpu_custom_call.1} parent=1 // pred_fallthru
      _
    %v61 = vld [vmem:[#allocation2] sm:$0xff]
    %v62 = vld [vmem:[%s4] sm:$0x1]
    %v64 = vlaneseq
    %v65 = vshrl.u32 %v64, 7
    %v66 = vsub.s32 0, %v65
    %v67 = vrot.slane %v62, %v66
    %v69 = vsub.f32 %v61, %v67
    %v70 = vpack.c.bf16 %v69, %v69
    %v71 = vld [vmem:[#allocation5] sm:$0xf]
    %v72 = vld [vmem:[#allocation5 + $0x4] sm:$0xf]
    %v73 = vld [vmem:[#allocation5 + $0x8] sm:$0xf]
    %v74 = vld [vmem:[#allocation5 + $0xc] sm:$0xf]
    %v75 = vld [vmem:[#allocation5 + $0x10] sm:$0xf]
    %v76 = vld [vmem:[#allocation5 + $0x14] sm:$0xf]
    %v77 = vld [vmem:[#allocation5 + $0x18] sm:$0xf]
    %v78 = vld [vmem:[#allocation5 + $0x1c] sm:$0xf]
    %v79 = vld [vmem:[#allocation5 + $0x20] sm:$0xf]
    %v80 = vld [vmem:[#allocation5 + $0x24] sm:$0xf]
    %v81 = vld [vmem:[#allocation5 + $0x28] sm:$0xf]
    %v82 = vld [vmem:[#allocation5 + $0x2c] sm:$0xf]
    %v83 = vld [vmem:[#allocation5 + $0x30] sm:$0xf]
    %v84 = vld [vmem:[#allocation5 + $0x34] sm:$0xf]
    %v85 = vld [vmem:[#allocation5 + $0x38] sm:$0xf]
    %v86 = vld [vmem:[#allocation5 + $0x3c] sm:$0xf]
    %v87 = vld [vmem:[%s2] sm:$0x1]
    %v89 = vlaneseq
    %v90 = vshrl.u32 %v89, 7
    %v91 = vsub.s32 0, %v90
    %v92 = vrot.slane %v87, %v91
    %v110 = vunpack.c.l.b16 %v71
    %v111 = vunpack.c.l.b16 %v72
    %v112 = vunpack.c.l.b16 %v73
    %v113 = vunpack.c.l.b16 %v74
    %v114 = vunpack.c.l.b16 %v75
    %v115 = vunpack.c.l.b16 %v76
    %v116 = vunpack.c.l.b16 %v77
    %v117 = vunpack.c.l.b16 %v78
    %v118 = vunpack.c.l.b16 %v79
    %v119 = vunpack.c.l.b16 %v80
    %v120 = vunpack.c.l.b16 %v81
    %v121 = vunpack.c.l.b16 %v82
    %v122 = vunpack.c.l.b16 %v83
    %v123 = vunpack.c.l.b16 %v84
    %v124 = vunpack.c.l.b16 %v85
    %v125 = vunpack.c.l.b16 %v86
    %v126 = vpack.c.b16 %v111, %v110
    %v127 = vpack.c.b16 %v113, %v112
    %v128 = vpack.c.b16 %v115, %v114
    %v129 = vpack.c.b16 %v117, %v116
    %v130 = vpack.c.b16 %v119, %v118
    %v131 = vpack.c.b16 %v121, %v120
    %v132 = vpack.c.b16 %v123, %v122
    %v133 = vpack.c.b16 %v125, %v124
    %142 = vmatprep.subr.bf16.mxu0 0
    %143 = vmatpush1.bf16.msra.mxu0 %v126
    %144 = vmatprep.subr.bf16.mxu0 0
    %145 = vmatpush1.bf16.msra.mxu0 %v127
    %146 = vmatprep.subr.bf16.mxu0 0
    %147 = vmatpush1.bf16.msra.mxu0 %v128
    %148 = vmatprep.subr.bf16.mxu0 0
    %149 = vmatpush1.bf16.msra.mxu0 %v129
    %150 = vmatprep.subr.bf16.mxu0 0
    %151 = vmatpush1.bf16.msra.mxu0 %v130
    %152 = vmatprep.subr.bf16.mxu0 0
    %153 = vmatpush1.bf16.msra.mxu0 %v131
    %154 = vmatprep.subr.bf16.mxu0 0
    %155 = vmatpush1.bf16.msra.mxu0 %v132
    %156 = vmatprep.subr.bf16.mxu0 0
    %157 = vmatpush1.bf16.msra.mxu0 %v133
    %158 = vmatprep.subr.bf16.mxu0 0
    %159 = vmatpush1.bf16.msra.mxu0 0
    %160 = vmatprep.subr.bf16.mxu0 0
    %161 = vmatpush1.bf16.msra.mxu0 0
    %162 = vmatprep.subr.bf16.mxu0 0
    %163 = vmatpush1.bf16.msra.mxu0 0
    %164 = vmatprep.subr.bf16.mxu0 0
    %165 = vmatpush1.bf16.msra.mxu0 0
    %166 = vmatprep.subr.bf16.mxu0 0
    %167 = vmatpush1.bf16.msra.mxu0 0
    %168 = vmatprep.subr.bf16.mxu0 0
    %169 = vmatpush1.bf16.msra.mxu0 0
    %170 = vmatprep.subr.bf16.mxu0 0
    %171 = vmatpush1.bf16.msra.mxu0 0
    %172 = vmatprep.subr.bf16.mxu0 0
    %173 = vmatpush1.bf16.msra.mxu0 0
    %174 = vmatprep.mubr.bf16.mxu0 0
    %175 = vmatmul.mubr.bf16.gmra.mrb[0].mxu0 %v70
    %v176 = vpop.f32.mrb[0].mxu0
    %v177 = vadd.f32 %v92, %v176
    %v178 = vpop.f32.mrb[0].mxu0
    %v179 = vpop.f32.mrb[0].mxu0
    %v180 = vpop.f32.mrb[0].mxu0
    %181 = vdwg.mxu0
    %v182 = vmax.f32 %v177, 0.0
    %183 = vmax.xlane.f32.xlu0 %v182
    %v184 = vpop.xlane.xlu0 %183
    %vm185 = vcmp.eq.f32.partialorder %v182, %v184
    %v186 = vsel %vm185, -inf, %v182
    %187 = vmax.xlane.f32.xlu0 %v186
    %v188 = vpop.xlane.xlu0 %187
    %vm189 = vcmp.eq.f32.partialorder %v186, %v188
    %v190 = vsel %vm189, -inf, %v186
    %191 = vmax.xlane.f32.xlu0 %v190
    %v192 = vpop.xlane.xlu0 %191
    %vm193 = vcmp.eq.f32.partialorder %v190, %v192
    %v194 = vsel %vm193, -inf, %v190
    %195 = vmax.xlane.f32.xlu0 %v194
    %v196 = vpop.xlane.xlu0 %195
    %vm197 = vcmp.eq.f32.partialorder %v194, %v196
    %v198 = vsel %vm197, -inf, %v194
    %199 = vmax.xlane.f32.xlu0 %v198
    %v200 = vpop.xlane.xlu0 %199
    %vm201 = vcmp.eq.f32.partialorder %v198, %v200
    %v202 = vsel %vm201, -inf, %v198
    %203 = vmax.xlane.f32.xlu0 %v202
    %v204 = vpop.xlane.xlu0 %203
    %vm205 = vcmp.eq.f32.partialorder %v202, %v204
    %v206 = vsel %vm205, -inf, %v202
    %207 = vmax.xlane.f32.xlu0 %v206
    %v208 = vpop.xlane.xlu0 %207
    %vm209 = vcmp.eq.f32.partialorder %v206, %v208
    %v210 = vsel %vm209, -inf, %v206
    %211 = vmax.xlane.f32.xlu0 %v210
    %v212 = vpop.xlane.xlu0 %211
    %vm213 = vcmp.ge.f32.partialorder %v182, %v212
    %vm214 = vcmp.gt.f32.partialorder %v182, 0.0
    %vm215 = vmand %vm213, %vm214
    %v216 = vsel %vm215, %v182, 0.0
    %v217 = vpack.c.bf16 %v216, %v216
    %v218 = vld [vmem:[#allocation7] sm:$0xf]
    %v219 = vld [vmem:[#allocation7 + $0x4] sm:$0xf]
    %v220 = vld [vmem:[#allocation7 + $0x8] sm:$0xf]
    %v221 = vld [vmem:[#allocation7 + $0xc] sm:$0xf]
    %v222 = vld [vmem:[#allocation7 + $0x10] sm:$0xf]
    %v223 = vld [vmem:[#allocation7 + $0x14] sm:$0xf]
    %v224 = vld [vmem:[#allocation7 + $0x18] sm:$0xf]
    %v225 = vld [vmem:[#allocation7 + $0x1c] sm:$0xf]
    %v226 = vld [vmem:[#allocation7 + $0x20] sm:$0xf]
    %v227 = vld [vmem:[#allocation7 + $0x24] sm:$0xf]
    %v228 = vld [vmem:[#allocation7 + $0x28] sm:$0xf]
    %v229 = vld [vmem:[#allocation7 + $0x2c] sm:$0xf]
    %v230 = vld [vmem:[#allocation7 + $0x30] sm:$0xf]
    %v231 = vld [vmem:[#allocation7 + $0x34] sm:$0xf]
    %v232 = vld [vmem:[#allocation7 + $0x38] sm:$0xf]
    %v233 = vld [vmem:[#allocation7 + $0x3c] sm:$0xf]
    %v250 = vunpack.c.l.b16 %v218
    %v251 = vunpack.c.l.b16 %v219
    %v252 = vunpack.c.l.b16 %v220
    %v253 = vunpack.c.l.b16 %v221
    %v254 = vunpack.c.l.b16 %v222
    %v255 = vunpack.c.l.b16 %v223
    %v256 = vunpack.c.l.b16 %v224
    %v257 = vunpack.c.l.b16 %v225
    %v258 = vunpack.c.l.b16 %v226
    %v259 = vunpack.c.l.b16 %v227
    %v260 = vunpack.c.l.b16 %v228
    %v261 = vunpack.c.l.b16 %v229
    %v262 = vunpack.c.l.b16 %v230
    %v263 = vunpack.c.l.b16 %v231
    %v264 = vunpack.c.l.b16 %v232
    %v265 = vunpack.c.l.b16 %v233
    %v266 = vpack.c.b16 %v251, %v250
    %v267 = vpack.c.b16 %v253, %v252
    %v268 = vpack.c.b16 %v255, %v254
    %v269 = vpack.c.b16 %v257, %v256
    %v270 = vpack.c.b16 %v259, %v258
    %v271 = vpack.c.b16 %v261, %v260
    %v272 = vpack.c.b16 %v263, %v262
    %v273 = vpack.c.b16 %v265, %v264
    %282 = vmatprep.subr.bf16.mxu0 0
    %283 = vmatpush1.bf16.msra.mxu0 %v266
    %284 = vmatprep.subr.bf16.mxu0 0
    %285 = vmatpush1.bf16.msra.mxu0 %v267
    %286 = vmatprep.subr.bf16.mxu0 0
    %287 = vmatpush1.bf16.msra.mxu0 %v268
    %288 = vmatprep.subr.bf16.mxu0 0
    %289 = vmatpush1.bf16.msra.mxu0 %v269
    %290 = vmatprep.subr.bf16.mxu0 0
    %291 = vmatpush1.bf16.msra.mxu0 %v270
    %292 = vmatprep.subr.bf16.mxu0 0
    %293 = vmatpush1.bf16.msra.mxu0 %v271
    %294 = vmatprep.subr.bf16.mxu0 0
    %295 = vmatpush1.bf16.msra.mxu0 %v272
    %296 = vmatprep.subr.bf16.mxu0 0
    %297 = vmatpush1.bf16.msra.mxu0 %v273
    %298 = vmatprep.subr.bf16.mxu0 0
    %299 = vmatpush1.bf16.msra.mxu0 0
    %300 = vmatprep.subr.bf16.mxu0 0
    %301 = vmatpush1.bf16.msra.mxu0 0
    %302 = vmatprep.subr.bf16.mxu0 0
    %303 = vmatpush1.bf16.msra.mxu0 0
    %304 = vmatprep.subr.bf16.mxu0 0
    %305 = vmatpush1.bf16.msra.mxu0 0
    %306 = vmatprep.subr.bf16.mxu0 0
    %307 = vmatpush1.bf16.msra.mxu0 0
    %308 = vmatprep.subr.bf16.mxu0 0
    %309 = vmatpush1.bf16.msra.mxu0 0
    %310 = vmatprep.subr.bf16.mxu0 0
    %311 = vmatpush1.bf16.msra.mxu0 0
    %312 = vmatprep.subr.bf16.mxu0 0
    %313 = vmatpush1.bf16.msra.mxu0 0
    %314 = vmatprep.mubr.bf16.mxu0 0
    %315 = vmatmul.mubr.bf16.gmra.mrb[0].mxu0 %v217
    %v316 = vpop.f32.mrb[0].mxu0
    %v317 = vadd.f32 %v67, %v316
    %v318 = vpop.f32.mrb[0].mxu0
    %v319 = vpop.f32.mrb[0].mxu0
    %v320 = vpop.f32.mrb[0].mxu0
    %321 = vdwg.mxu0
    %322 = vst [vmem:[#allocation8] sm:$0xff] %v317
    // Predicated region
    $region34: #{tpu_custom_call.1} parent=1 // pred_check
      _
    $region35: #{tpu_custom_call.1} parent=1 // pred_check_branch
      %324 = sbr.rel (0) target = $region37
    $region36: #{tpu_custom_call.1} parent=1 // pred_region
      %s326 = ssub.s32 128, 128
      %327 = vsyncadd [#allocation4], %s326
      %s329 = sshll.u32 [#allocation8], 4
      %s330 = int_to_ptr.vmem [resolvable:$true] %s329
      %332 = dma.vmem_to_hbm [thread:$0]  %s330, 128, %s5, [#allocation4]
    $region37: #{tpu_custom_call.1} parent=1 // pred_fallthru
      _
    // Predicated region
    $region38: #{tpu_custom_call.1} parent=1 // pred_check
      _
    $region39: #{tpu_custom_call.1} parent=1 // pred_check_branch
      %334 = sbr.rel (0) target = $region41
    $region40: #{tpu_custom_call.1} parent=1 // pred_region
      %335 = dma.done [#allocation4], 128
    $region41: #{tpu_custom_call.1} parent=1 // pred_fallthru
      _
    %336 = vsyncpa [#allocation3], 1
    %337 = vsyncpa [#allocation6], 1
    %338 = vsyncpa [#allocation4], 1

</llo_original>
